<compile_context>
chip_gen: v7x
topology: tpu7x:2x2x1
jax: 0.10.0
libtpu: 0.0.40
codegen_flags: <defaults>
</compile_context>

<pallas_src>
import jax
import jax.numpy as jnp
from jax.experimental import pallas as pl
from jax.experimental.pallas import tpu as pltpu

_SUBLANE = 8            # f32 sublane granularity (second-to-last dim)
_NO_GRID_MAX = 256      # below this, a single no-grid call is cheapest everywhere
_MAX_BATCH_TILE = 1024  # per-tile VMEM stays ~1 MiB double-buffered -> safe on all gens


def _encoder_kernel(x_ref, w_ref, b_ref, o_ref):
    # x_ref: (TB, in_dim)   w_ref: (in_dim, hidden)   b_ref: (1, hidden)
    # MXU matmul with f32 accumulation; bias add on the VPU; tanh on the EUP.
    x = x_ref[...].astype(w_ref.dtype)  # in-kernel cast (free VPU op; no-op for f32)
    y = jnp.dot(x, w_ref[...], preferred_element_type=jnp.float32)
    o_ref[...] = jnp.tanh(y + b_ref[...]).astype(o_ref.dtype)


def prepare_encoder_params(weight, bias, compute_dtype=jnp.float32):
    """One-time parameter prep (transpose/reshape hoisted out of the call path).

    weight: (hidden, in_dim)  -- PyTorch nn.Linear convention
    bias:   (hidden,)
    Returns:
      w_p: (in_dim, hidden) pre-transposed weights in `compute_dtype`
      b_p: (1, hidden) float32 bias (epilogue is always f32)
    Keep compute_dtype=float32 for bit-faithful nn.Linear+Tanh numerics;
    bf16 only pays off if this GEMM is fused into a larger matmul.
    """
    w_p = jnp.asarray(weight, compute_dtype).T
    b_p = jnp.asarray(bias, jnp.float32).reshape(1, -1)
    return w_p, b_p


def _round_up(n, m):
    return ((n + m - 1) // m) * m


def _choose_batch_tile(B, batch_tile):
    if batch_tile is not None:
        return max(_SUBLANE, _round_up(batch_tile, _SUBLANE))
    # Tiles as large as possible (amortize ~0.35 us/step), but always >= 2
    # tiles so the "parallel" grid axis can be sharded across both
    # TensorCores on v7x (extra step is negligible on 1-TC v5e/v6e).
    return min(_MAX_BATCH_TILE, _round_up(pl.cdiv(B, 2), _SUBLANE))


def encoder_forward(x, w_p, b_p, *, batch_tile=None):
    """
    x:   (B, in_dim) float
    w_p: (in_dim, hidden)  from prepare_encoder_params
    b_p: (1, hidden)
    returns (B, hidden) float32, == tanh(x @ W.T + b)
    """
    B, in_dim = x.shape
    hidden = w_p.shape[1]

    cost = pl.CostEstimate(
        flops=2 * B * in_dim * hidden,
        transcendentals=B * hidden,
        bytes_accessed=(x.size * x.dtype.itemsize
                        + w_p.size * w_p.dtype.itemsize
                        + b_p.size * b_p.dtype.itemsize
                        + B * hidden * 4),
    )
    out_shape = jax.ShapeDtypeStruct((B, hidden), jnp.float32)

    if B <= _NO_GRID_MAX:
        # Tiny problem: no grid, whole operands resident in VMEM, one MXU pass.
        vmem = pltpu.MemorySpace.VMEM
        return pl.pallas_call(
            _encoder_kernel,
            out_shape=out_shape,
            in_specs=[pl.BlockSpec(memory_space=vmem)] * 3,
            out_specs=pl.BlockSpec(memory_space=vmem),
            cost_estimate=cost,
        )(x, w_p, b_p)

    # Gridded path: tile only the batch axis; weights/bias are reused every
    # step (block index (0, 0)).  Partial last tile is handled by Pallas
    # masked writeback (garbage rows flow through matmul/tanh harmlessly; no
    # batch-axis reduction happens inside the kernel).
    tb = _choose_batch_tile(B, batch_tile)
    grid = (pl.cdiv(B, tb),)
    return pl.pallas_call(
        _encoder_kernel,
        out_shape=out_shape,
        grid=grid,
        in_specs=[
            pl.BlockSpec((tb, in_dim), lambda i: (i, 0)),
            pl.BlockSpec((in_dim, hidden), lambda i: (0, 0)),
            pl.BlockSpec((1, hidden), lambda i: (0, 0)),
        ],
        out_specs=pl.BlockSpec((tb, hidden), lambda i: (i, 0)),
        compiler_params=pltpu.CompilerParams(
            dimension_semantics=("parallel",),
        ),
        cost_estimate=cost,
    )(x, w_p, b_p)


if __name__ == "__main__":
    # Small shapes consistent with the module: batch=8, in_dim=16, hidden=32.
    B, in_dim, hidden = 8, 16, 32

    key = jax.random.PRNGKey(0)
    kx, kw, kb, kx2 = jax.random.split(key, 4)

    # Deterministic init mimicking nn.Linear's uniform(-1/sqrt(in), 1/sqrt(in)).
    bound = 1.0 / (in_dim ** 0.5)
    weight = jax.random.uniform(kw, (hidden, in_dim), jnp.float32, -bound, bound)
    bias = jax.random.uniform(kb, (hidden,), jnp.float32, -bound, bound)

    # One-time parameter prep (transpose/reshape hoisted out of forward).
    w_p, b_p = prepare_encoder_params(weight, bias)

    # --- small-batch (no-grid) path: the shapes the module actually sees ---
    x = jax.random.normal(kx, (B, in_dim), jnp.float32)
    out = jax.block_until_ready(encoder_forward(x, w_p, b_p))
    ref = jnp.tanh(x @ weight.T + bias)
    assert out.shape == (B, hidden)
    assert jnp.allclose(out, ref, atol=1e-5, rtol=1e-5)

    # --- gridded path: >= 2 "parallel" tiles, partial last tile exercised ---
    B2 = 1000
    x2 = jax.random.normal(kx2, (B2, in_dim), jnp.float32)
    out2 = jax.block_until_ready(encoder_forward(x2, w_p, b_p))
    ref2 = jnp.tanh(x2 @ weight.T + bias)
    assert out2.shape == (B2, hidden)
    assert jnp.allclose(out2, ref2, atol=1e-5, rtol=1e-5)

    print("KERNEL_OK")
</pallas_src>

<mosaic_0001>
module attributes {stable_mosaic.version = 11 : i64} {
  func.func @_encoder_kernel(%arg0: memref<8x16xf32, #tpu.memory_space<vmem>>, %arg1: memref<16x32xf32, #tpu.memory_space<vmem>>, %arg2: memref<1x32xf32, #tpu.memory_space<vmem>>, %arg3: memref<8x32xf32, #tpu.memory_space<vmem>>) attributes {dimension_semantics = [], scalar_prefetch = 0 : i64, scratch_operands = 0 : i64, tpu.core_type = #tpu.core_type<tc>} {
    %c0 = arith.constant 0 : index
    %c0_0 = arith.constant 0 : index
    %0 = vector.load %arg0[%c0, %c0_0] : memref<8x16xf32, #tpu.memory_space<vmem>>, vector<8x16xf32>
    %c0_1 = arith.constant 0 : index
    %c0_2 = arith.constant 0 : index
    %1 = vector.load %arg1[%c0_1, %c0_2] : memref<16x32xf32, #tpu.memory_space<vmem>>, vector<16x32xf32>
    %cst = arith.constant dense<0.000000e+00> : vector<8x32xf32>
    %2 = tpu.matmul %0, %1, %cst {dimension_numbers = #tpu.dot_dimension_numbers<[1], [0], [0], [1], [0, 0, 1, 1], [], []>} : vector<8x16xf32>, vector<16x32xf32>, vector<8x32xf32> -> vector<8x32xf32>
    %c0_3 = arith.constant 0 : index
    %c0_4 = arith.constant 0 : index
    %3 = vector.load %arg2[%c0_3, %c0_4] : memref<1x32xf32, #tpu.memory_space<vmem>>, vector<1x32xf32>
    %4 = vector.broadcast %3 : vector<1x32xf32> to vector<8x32xf32>
    %5 = arith.addf %2, %4 : vector<8x32xf32>
    %6 = math.tanh %5 : vector<8x32xf32>
    %c0_5 = arith.constant 0 : index
    %c0_6 = arith.constant 0 : index
    %7 = vector.load %arg3[%c0_5, %c0_6] : memref<8x32xf32, #tpu.memory_space<vmem>>, vector<8x32xf32>
    tpu.vector_store %arg3[%c0_5, %c0_6], %6 {strides = array<i32>} : memref<8x32xf32, #tpu.memory_space<vmem>>, vector<8x32xf32>,
    return
  }
}

</mosaic_0001>

<llo_original>
// kernel: tpu_custom_call.1
$region0: #{tpu_custom_call.1}
  #allocation0 [shape = 'u32[]', space=smem, size = 0x4, offset = 0x4, fixed_abs, tag = 'smem constant byte address 0x4 - core index']
  #allocation1 [shape = 'u32[144,128]{1,0:T(1,128)}', space=vmem, size = 0x12000, scoped, tag = 'internal scratch']
  %s0 = inlined_call_operand.hbm [shape: f32[8,16], index: 0, kind: input, shape index: {}]
  %s1 = inlined_call_operand.hbm [shape: f32[16,32], index: 1, kind: input, shape index: {}]
  %s2 = inlined_call_operand.vmem [shape: f32[1,32], index: 2, kind: input, shape index: {}]
  %s3 = inlined_call_operand.hbm [shape: f32[8,32], index: 3, kind: output, shape index: {}]
  %s4 = sld [smem:[#allocation0]]
  $region30: #{tpu_custom_call.1} parent=0
    _
  %s6 = ssub.s32 1, %s4
  %s7 = scalar_select 0, %s6, %s4
  $region1: #{tpu_custom_call.1} parent=0
    #allocation2 [shape = 'u8[4096]{0}', space=vmem, size = 0x1000, scoped, tag = 'input window, operand 0, single buffered']
    #allocation3 [shape = 's32[1]{0}', space=sflag, size = 0x4, scoped, tag = 'scoped memory for tpu_custom_call.1']
    #allocation4 [shape = 's32[1]{0}', space=sflag, size = 0x4, scoped, tag = 'scoped memory for tpu_custom_call.1']
    #allocation5 [shape = 'u8[8192]{0}', space=vmem, size = 0x2000, scoped, tag = 'input window, operand 1, single buffered']
    #allocation6 [shape = 's32[1]{0}', space=sflag, size = 0x4, scoped, tag = 'scoped memory for tpu_custom_call.1']
    #allocation7 [shape = 'u8[4096]{0}', space=vmem, size = 0x1000, scoped, tag = 'output window, operand 0, single buffered']
    %8 = vsyncpa [#allocation3], 0
    %9 = vsyncpa [#allocation6], 0
    %10 = vsyncpa [#allocation4], 0
    // Predicated region
    $region2: #{tpu_custom_call.1} parent=1 // pred_check
      _
    $region3: #{tpu_custom_call.1} parent=1 // pred_check_branch
      %12 = sbr.rel (0) target = $region5
    $region4: #{tpu_custom_call.1} parent=1 // pred_region
      %s14 = ssub.s32 128, 128
      %15 = vsyncadd [#allocation3], %s14
      %s17 = sshll.u32 [#allocation2], 4
      %s18 = int_to_ptr.vmem [resolvable:$true] %s17
      %20 = dma.hbm_to_vmem [thread:$0]  %s0, 128, %s18, [#allocation3]
    $region5: #{tpu_custom_call.1} parent=1 // pred_fallthru
      _
    // Predicated region
    $region6: #{tpu_custom_call.1} parent=1 // pred_check
      _
    $region7: #{tpu_custom_call.1} parent=1 // pred_check_branch
      %22 = sbr.rel (0) target = $region9
    $region8: #{tpu_custom_call.1} parent=1 // pred_region
      %s24 = ssub.s32 256, 256
      %25 = vsyncadd [#allocation6], %s24
      %s26 = sshll.u32 [#allocation5], 4
      %s27 = int_to_ptr.vmem [resolvable:$true] %s26
      %32 = dma.hbm_to_vmem [thread:$0]  %s1, 256, %s27, [#allocation6], 128, 128, 8
    $region9: #{tpu_custom_call.1} parent=1 // pred_fallthru
      _
    // Predicated region
    $region10: #{tpu_custom_call.1} parent=1 // pred_check
      _
    $region11: #{tpu_custom_call.1} parent=1 // pred_check_branch
      %34 = sbr.rel (0) target = $region13
    $region12: #{tpu_custom_call.1} parent=1 // pred_region
      _
    $region13: #{tpu_custom_call.1} parent=1 // pred_fallthru
      _
    // Predicated region
    $region14: #{tpu_custom_call.1} parent=1 // pred_check
      _
    $region15: #{tpu_custom_call.1} parent=1 // pred_check_branch
      %36 = sbr.rel (0) target = $region17
    $region16: #{tpu_custom_call.1} parent=1 // pred_region
      %37 = dma.done [#allocation3], 128
    $region17: #{tpu_custom_call.1} parent=1 // pred_fallthru
      _
    // Predicated region
    $region18: #{tpu_custom_call.1} parent=1 // pred_check
      _
    $region19: #{tpu_custom_call.1} parent=1 // pred_check_branch
      %39 = sbr.rel (0) target = $region21
    $region20: #{tpu_custom_call.1} parent=1 // pred_region
      %40 = dma.done [#allocation6], 256
    $region21: #{tpu_custom_call.1} parent=1 // pred_fallthru
      _
    %v41 = vld [vmem:[#allocation2] sm:$0xff]
    %v42 = vld [vmem:[#allocation5] sm:$0xff]
    %v43 = vld [vmem:[#allocation5 + $0x8] sm:$0xff]
    %v44 = vld [vmem:[%s2] sm:$0x1]
    %v46 = vlaneseq
    %v47 = vshrl.u32 %v46, 7
    %v48 = vsub.s32 0, %v47
    %v49 = vrot.slane %v44, %v48
    %vm51 = vcmask 130048
    %v53 = vsel %vm51, %v41, 0
    %55 = vmatprep.subr.mxu0 0.0
    %56 = vmatpush1.msra.mxu0 %v42
    %57 = vmatprep.subr.mxu0 0.0
    %58 = vmatpush1.msra.mxu0 %v43
    %59 = vmatprep.subr.mxu0 0.0
    %60 = vmatpush1.msra.mxu0 0.0
    %61 = vmatprep.subr.mxu0 0.0
    %62 = vmatpush1.msra.mxu0 0.0
    %63 = vmatprep.subr.mxu0 0.0
    %64 = vmatpush1.msra.mxu0 0.0
    %65 = vmatprep.subr.mxu0 0.0
    %66 = vmatpush1.msra.mxu0 0.0
    %67 = vmatprep.subr.mxu0 0.0
    %68 = vmatpush1.msra.mxu0 0.0
    %69 = vmatprep.subr.mxu0 0.0
    %70 = vmatpush1.msra.mxu0 0.0
    %71 = vmatprep.subr.mxu0 0.0
    %72 = vmatpush1.msra.mxu0 0.0
    %73 = vmatprep.subr.mxu0 0.0
    %74 = vmatpush1.msra.mxu0 0.0
    %75 = vmatprep.subr.mxu0 0.0
    %76 = vmatpush1.msra.mxu0 0.0
    %77 = vmatprep.subr.mxu0 0.0
    %78 = vmatpush1.msra.mxu0 0.0
    %79 = vmatprep.subr.mxu0 0.0
    %80 = vmatpush1.msra.mxu0 0.0
    %81 = vmatprep.subr.mxu0 0.0
    %82 = vmatpush1.msra.mxu0 0.0
    %83 = vmatprep.subr.mxu0 0.0
    %84 = vmatpush1.msra.mxu0 0.0
    %85 = vmatprep.subr.mxu0 0.0
    %86 = vmatpush1.msra.mxu0 0.0
    %87 = vmatprep.subr.mxu0 0.0
    %88 = vmatpush1.msra.mxu0 0.0
    %89 = vmatprep.subr.mxu0 0.0
    %90 = vmatpush1.msra.mxu0 0.0
    %91 = vmatprep.subr.mxu0 0.0
    %92 = vmatpush1.msra.mxu0 0.0
    %93 = vmatprep.subr.mxu0 0.0
    %94 = vmatpush1.msra.mxu0 0.0
    %95 = vmatprep.subr.mxu0 0.0
    %96 = vmatpush1.msra.mxu0 0.0
    %97 = vmatprep.subr.mxu0 0.0
    %98 = vmatpush1.msra.mxu0 0.0
    %99 = vmatprep.subr.mxu0 0.0
    %100 = vmatpush1.msra.mxu0 0.0
    %101 = vmatprep.subr.mxu0 0.0
    %102 = vmatpush1.msra.mxu0 0.0
    %103 = vmatprep.subr.mxu0 0.0
    %104 = vmatpush1.msra.mxu0 0.0
    %105 = vmatprep.subr.mxu0 0.0
    %106 = vmatpush1.msra.mxu0 0.0
    %107 = vmatprep.subr.mxu0 0.0
    %108 = vmatpush1.msra.mxu0 0.0
    %109 = vmatprep.subr.mxu0 0.0
    %110 = vmatpush1.msra.mxu0 0.0
    %111 = vmatprep.subr.mxu0 0.0
    %112 = vmatpush1.msra.mxu0 0.0
    %113 = vmatprep.subr.mxu0 0.0
    %114 = vmatpush1.msra.mxu0 0.0
    %115 = vmatprep.subr.mxu0 0.0
    %116 = vmatpush1.msra.mxu0 0.0
    %117 = vmatprep.subr.mxu0 0.0
    %118 = vmatpush1.msra.mxu0 0.0
    %119 = vmatprep.mubr.f32.mxu0 0.0
    %120 = vmatmul.mubr.f32.gmra.mrb[0].mxu0 %v53
    %v121 = vpop.f32.mrb[0].mxu0
    %v122 = vadd.f32 %v49, %v121
    %v123 = vpop.f32.mrb[0].mxu0
    %124 = vdwg.mxu0
    %v125 = vtanh.pop %v122
    %vm126 = vcmask 261120
    %127 = vst.msk [vmem:[#allocation7] sm:$0xff] %vm126, %v125
    // Predicated region
    $region22: #{tpu_custom_call.1} parent=1 // pred_check
      _
    $region23: #{tpu_custom_call.1} parent=1 // pred_check_branch
      %129 = sbr.rel (0) target = $region25
    $region24: #{tpu_custom_call.1} parent=1 // pred_region
      %s131 = ssub.s32 128, 128
      %132 = vsyncadd [#allocation4], %s131
      %s134 = sshll.u32 [#allocation7], 4
      %s135 = int_to_ptr.vmem [resolvable:$true] %s134
      %137 = dma.vmem_to_hbm [thread:$0]  %s135, 128, %s3, [#allocation4]
    $region25: #{tpu_custom_call.1} parent=1 // pred_fallthru
      _
    // Predicated region
    $region26: #{tpu_custom_call.1} parent=1 // pred_check
      _
    $region27: #{tpu_custom_call.1} parent=1 // pred_check_branch
      %139 = sbr.rel (0) target = $region29
    $region28: #{tpu_custom_call.1} parent=1 // pred_region
      %140 = dma.done [#allocation4], 128
    $region29: #{tpu_custom_call.1} parent=1 // pred_fallthru
      _
    %141 = vsyncpa [#allocation3], 1
    %142 = vsyncpa [#allocation6], 1
    %143 = vsyncpa [#allocation4], 1

</llo_original>
